<compile_context>
chip_gen: v5e
topology: v5e:2x2
jax: 0.10.0
libtpu: 0.0.40
codegen_flags: <defaults>
</compile_context>

<pallas_src>
import math

import jax
import jax.numpy as jnp
from jax import lax
from jax.experimental import pallas as pl
from jax.experimental.pallas import tpu as pltpu


def _gelu_exact(y):
    # PyTorch F.gelu default = exact erf-based GELU (kept for parity).
    return 0.5 * y * (1.0 + lax.erf(y * (1.0 / math.sqrt(2.0))))


def mlp_kernel(x_ref, w_ref, b_ref, o_ref, h_ref):
    """Grid = (batch_tile b, layer l, out_chunk n).

    x_ref: (TB, D)     input activations (read once, at layer 0)
    w_ref: (D, TN)     contiguous bf16 weight chunk for (layer l, chunk n), (in, out)
    b_ref: (1, TN)     f32 bias chunk
    o_ref: (TB, D)     output block (resident across l and n)
    h_ref: (2, TB, D)  bf16 ping-pong scratch carrying activations across layers
    """
    l = pl.program_id(1)
    n = pl.program_id(2)
    num_layers = pl.num_programs(1)
    tn = w_ref.shape[-1]

    # Load the input activations into the ping-pong buffer once per batch tile.
    @pl.when(jnp.logical_and(l == 0, n == 0))
    def _():
        h_ref[0] = x_ref[...].astype(jnp.bfloat16)

    src = l % 2
    dst = (l + 1) % 2

    # bf16 LHS/RHS on the MXU with f32 accumulation.
    y = jnp.dot(h_ref[src], w_ref[...], preferred_element_type=jnp.float32)
    y = _gelu_exact(y + b_ref[...])

    off = pl.multiple_of(n * tn, tn)  # lane-aligned chunk offset

    # Carry to the next layer (skipped on the final layer: nothing reads it).
    @pl.when(l < num_layers - 1)
    def _():
        h_ref[dst, :, pl.ds(off, tn)] = y.astype(jnp.bfloat16)

    @pl.when(l == num_layers - 1)
    def _():
        o_ref[:, pl.ds(off, tn)] = y.astype(o_ref.dtype)


def _vmem_capacity_bytes():
    """Physical VMEM per TensorCore (v5e/v6e: 128 MiB, v7x: 64 MiB)."""
    try:
        return int(pltpu.get_tpu_info().vmem_capacity_bytes)
    except Exception:
        return 64 << 20  # conservative fallback (v7x budget)


def _pick_tile(total, cap, mult):
    """Largest tile <= cap that divides `total` and is a multiple of `mult`
    (falls back to `total` when no such divisor exists)."""
    if total <= cap:
        return total
    t = (cap // mult) * mult
    while t >= mult:
        if total % t == 0:
            return t
        t -= mult
    return total


def choose_tn(D, w_bytes=2, vmem_budget=None):
    """Output-feature chunk: full D for small hidden dims (fewer grid steps),
    otherwise bounded so the double-buffered weight chunk takes <=1/3 of VMEM."""
    if vmem_budget is None:
        vmem_budget = _vmem_capacity_bytes() - (8 << 20)
    if D <= 2048:
        return D
    tn_cap = (vmem_budget // 3) // (2 * D * w_bytes)
    tn_cap = max(128, (tn_cap // 128) * 128)
    return _pick_tile(D, min(tn_cap, D), 128)


def _choose_tb(B, D, TN, x_bytes, w_bytes, vmem_budget):
    """Largest batch tile fitting the VMEM budget: arithmetic intensity w.r.t.
    the streamed weights is ~TB flops/byte, so bigger TB => more weight reuse."""
    sub = 16 if B % 16 == 0 else 8                       # bf16 scratch sublane packing
    fixed = 2 * D * TN * w_bytes + 2 * TN * 4            # weight + bias double buffers
    per_row = D * (2 * x_bytes + 2 * x_bytes + 2 * 2)    # x + out blocks (DB) + bf16 ping-pong
    avail = max(vmem_budget - fixed, per_row * sub)
    tb_cap = max(sub, min(1024, avail // per_row))
    TB = _pick_tile(B, (tb_cap // sub) * sub, sub)
    # Megacore / v7x second TensorCore: prefer >=2 batch tiles when each half
    # still keeps high weight reuse (per-TC ridge is ~600 flops per weight byte).
    if B == TB and TB >= 1024 and (TB // 2) % sub == 0:
        TB = TB // 2
    return TB


def prepare_params(weights, biases, tn, weight_dtype=jnp.bfloat16):
    """One-time (model-init / weight-load) preparation -- OFF the per-call hot path.

    weights: (L, D_out, D_in)  PyTorch nn.Linear convention
    biases:  (L, D_out)

    Returns:
      w_chunked: (L, D_out//tn, D_in, tn)  bf16, (in, out) layout, out-chunk-major,
                 so each (D_in, tn) weight chunk is one contiguous HBM block.
      b:         (L, 1, D_out) f32
    """
    L, D_out, D_in = weights.shape
    assert D_out % tn == 0, (D_out, tn)
    w = jnp.transpose(weights, (0, 2, 1)).astype(weight_dtype)      # (L, D_in, D_out)
    w = w.reshape(L, D_in, D_out // tn, tn).transpose(0, 2, 1, 3)   # (L, NC, D_in, tn)
    b = biases.reshape(L, 1, D_out).astype(jnp.float32)
    return w, b


def mlp_forward(x, w_chunked, b_prepped):
    """x: (B, D); w_chunked: (L, D//TN, D, TN) bf16; b_prepped: (L, 1, D) f32."""
    B, D = x.shape
    L, NC, D_in, TN = w_chunked.shape
    assert D_in == D and NC * TN == D, (w_chunked.shape, x.shape)

    x_bytes = jnp.dtype(x.dtype).itemsize
    w_bytes = jnp.dtype(w_chunked.dtype).itemsize

    vmem_cap = _vmem_capacity_bytes()
    vmem_budget = vmem_cap - (8 << 20)
    TB = _choose_tb(B, D, TN, x_bytes, w_bytes, vmem_budget)
    grid = (B // TB, L, D // TN)

    # Actual tile budget: double-buffered weight/bias chunks, resident x/out
    # blocks, bf16 activation ping-pong scratch.
    vmem_need = (2 * D * TN * w_bytes      # weight chunk (double-buffered)
                 + 2 * TN * 4              # bias chunk
                 + 2 * TB * D * x_bytes    # x block
                 + 2 * TB * D * x_bytes    # out block
                 + 2 * TB * D * 2)         # bf16 activation ping-pong scratch
    if vmem_need > vmem_cap:
        raise ValueError(
            f"tile plan needs {vmem_need >> 20} MiB VMEM but only "
            f"{vmem_cap >> 20} MiB is available; B={B}, D={D} do not tile cleanly")
    vmem_limit = int(min(max(2 * vmem_need, 32 << 20), vmem_cap))

    return pl.pallas_call(
        mlp_kernel,
        out_shape=jax.ShapeDtypeStruct((B, D), x.dtype),
        grid_spec=pltpu.PrefetchScalarGridSpec(
            num_scalar_prefetch=0,
            grid=grid,
            in_specs=[
                # x: resident per batch tile.
                pl.BlockSpec((TB, D), lambda b, l, n: (b, 0)),
                # weight chunk (l, n): one contiguous (D, TN) block.
                pl.BlockSpec((pl.Squeezed(), pl.Squeezed(), D, TN),
                             lambda b, l, n: (l, n, 0, 0)),
                # bias chunk.
                pl.BlockSpec((pl.Squeezed(), 1, TN), lambda b, l, n: (l, 0, n)),
            ],
            out_specs=pl.BlockSpec((TB, D), lambda b, l, n: (b, 0)),  # resident per b
            scratch_shapes=[pltpu.VMEM((2, TB, D), jnp.bfloat16)],
        ),
        compiler_params=pltpu.CompilerParams(
            dimension_semantics=("parallel", "arbitrary", "arbitrary"),
            vmem_limit_bytes=vmem_limit,
        ),
    )(x, w_chunked, b_prepped)


def mlp_reference(x, weights, biases):
    h = x.astype(jnp.float32)
    for l in range(weights.shape[0]):
        h = h @ weights[l].T + biases[l]
        h = _gelu_exact(h)
    return h.astype(x.dtype)


if __name__ == "__main__":
    B, D, L = 16, 256, 3  # batch, hidden dim, num_layers

    key = jax.random.PRNGKey(0)
    kx, kw, kb = jax.random.split(key, 3)

    x = jax.random.normal(kx, (B, D), dtype=jnp.float32)
    # Deterministic init mimicking nn.Linear's U(-1/sqrt(dim), 1/sqrt(dim)).
    bound = 1.0 / math.sqrt(D)
    weights = jax.random.uniform(kw, (L, D, D), minval=-bound, maxval=bound,
                                 dtype=jnp.float32)  # (L, D_out, D_in)
    biases = jax.random.uniform(kb, (L, D), minval=-bound, maxval=bound,
                                dtype=jnp.float32)

    # One-time parameter prep (transpose + bf16 cast + contiguous chunking) --
    # not in the per-call hot path.
    TN = choose_tn(D)
    w_p, b_p = prepare_params(weights, biases, TN)

    out = jax.block_until_ready(mlp_forward(x, w_p, b_p))

    ref = mlp_reference(x, weights, biases)
    assert out.shape == (B, D)
    # bf16 weight/activation streaming (f32 MXU accumulation) => loosened
    # tolerance vs the pure-f32 reference.
    assert jnp.allclose(out, ref, atol=3e-2, rtol=3e-2), "mismatch vs reference"

    print("KERNEL_OK")
</pallas_src>

<mosaic_0001>
module attributes {stable_mosaic.version = 11 : i64} {
  func.func @mlp_kernel(%arg0: i32, %arg1: i32, %arg2: i32, %arg3: memref<16x256xf32, #tpu.memory_space<vmem>>, %arg4: memref<1x1x256x256xbf16, #tpu.memory_space<vmem>>, %arg5: memref<1x1x256xf32, #tpu.memory_space<vmem>>, %arg6: memref<16x256xf32, #tpu.memory_space<vmem>>, %arg7: memref<2x16x256xbf16, #tpu.memory_space<vmem>>) attributes {dimension_semantics = [#tpu.dimension_semantics<parallel>, #tpu.dimension_semantics<arbitrary>, #tpu.dimension_semantics<arbitrary>], iteration_bounds = array<i64: 1, 3, 1>, scalar_prefetch = 0 : i64, scratch_operands = 1 : i64, tpu.core_type = #tpu.core_type<tc>, window_params = [{transform_indices = @transform_0, window_bounds = array<i64: 16, 256>}, {transform_indices = @transform_1, window_bounds = array<i64: 1, 1, 256, 256>}, {transform_indices = @transform_2, window_bounds = array<i64: 1, 1, 256>}, {transform_indices = @transform_3, window_bounds = array<i64: 16, 256>}]} {
    %c0_i32 = arith.constant 0 : i32
    %0 = arith.cmpi eq, %arg1, %c0_i32 : i32
    %c0_i32_0 = arith.constant 0 : i32
    %1 = arith.cmpi eq, %arg2, %c0_i32_0 : i32
    %2 = arith.andi %0, %1 : i1
    %3 = arith.extui %2 : i1 to i32
    %c0_i32_1 = arith.constant 0 : i32
    %4 = arith.cmpi ne, %3, %c0_i32_1 : i32
    scf.if %4 {
      %c0_28 = arith.constant 0 : index
      %c0_29 = arith.constant 0 : index
      %52 = vector.load %arg3[%c0_28, %c0_29] : memref<16x256xf32, #tpu.memory_space<vmem>>, vector<16x256xf32>
      %53 = arith.truncf %52 : vector<16x256xf32> to vector<16x256xbf16>
      %c0_30 = arith.constant 0 : index
      %c0_31 = arith.constant 0 : index
      %c0_32 = arith.constant 0 : index
      %54 = vector.load %arg7[%c0_30, %c0_31, %c0_32] : memref<2x16x256xbf16, #tpu.memory_space<vmem>>, vector<1x16x256xbf16>
      %55 = vector.shape_cast %54 : vector<1x16x256xbf16> to vector<16x256xbf16>
      %56 = vector.shape_cast %53 : vector<16x256xbf16> to vector<1x16x256xbf16>
      tpu.vector_store %arg7[%c0_30, %c0_31, %c0_32], %56 {strides = array<i32>} : memref<2x16x256xbf16, #tpu.memory_space<vmem>>, vector<1x16x256xbf16>,
    } else {
    }
    %c2_i32 = arith.constant 2 : i32
    %c0_i32_2 = arith.constant 0 : i32
    %5 = arith.cmpi eq, %c2_i32, %c0_i32_2 : i32
    %c1_i32 = arith.constant 1 : i32
    %6 = arith.select %5, %c1_i32, %c2_i32 : i32
    %7 = arith.remsi %arg1, %6 : i32
    %c0_i32_3 = arith.constant 0 : i32
    %8 = arith.cmpi ne, %7, %c0_i32_3 : i32
    %c0_i32_4 = arith.constant 0 : i32
    %9 = arith.cmpi slt, %7, %c0_i32_4 : i32
    %c0_i32_5 = arith.constant 0 : i32
    %10 = arith.cmpi slt, %6, %c0_i32_5 : i32
    %11 = arith.xori %9, %10 : i1
    %12 = arith.andi %11, %8 : i1
    %13 = arith.addi %7, %6 : i32
    %14 = arith.select %12, %13, %7 : i32
    %c1_i32_6 = arith.constant 1 : i32
    %15 = arith.addi %arg1, %c1_i32_6 : i32
    %c2_i32_7 = arith.constant 2 : i32
    %c0_i32_8 = arith.constant 0 : i32
    %16 = arith.cmpi eq, %c2_i32_7, %c0_i32_8 : i32
    %c1_i32_9 = arith.constant 1 : i32
    %17 = arith.select %16, %c1_i32_9, %c2_i32_7 : i32
    %18 = arith.remsi %15, %17 : i32
    %c0_i32_10 = arith.constant 0 : i32
    %19 = arith.cmpi ne, %18, %c0_i32_10 : i32
    %c0_i32_11 = arith.constant 0 : i32
    %20 = arith.cmpi slt, %18, %c0_i32_11 : i32
    %c0_i32_12 = arith.constant 0 : i32
    %21 = arith.cmpi slt, %17, %c0_i32_12 : i32
    %22 = arith.xori %20, %21 : i1
    %23 = arith.andi %22, %19 : i1
    %24 = arith.addi %18, %17 : i32
    %25 = arith.select %23, %24, %18 : i32
    %26 = arith.index_cast %14 : i32 to index
    %c0 = arith.constant 0 : index
    %c0_13 = arith.constant 0 : index
    %27 = vector.load %arg7[%26, %c0, %c0_13] : memref<2x16x256xbf16, #tpu.memory_space<vmem>>, vector<1x16x256xbf16>
    %28 = vector.shape_cast %27 : vector<1x16x256xbf16> to vector<16x256xbf16>
    %c0_14 = arith.constant 0 : index
    %c0_15 = arith.constant 0 : index
    %c0_16 = arith.constant 0 : index
    %c0_17 = arith.constant 0 : index
    %29 = vector.load %arg4[%c0_14, %c0_15, %c0_16, %c0_17] : memref<1x1x256x256xbf16, #tpu.memory_space<vmem>>, vector<1x1x256x256xbf16>
    %30 = vector.shape_cast %29 : vector<1x1x256x256xbf16> to vector<256x256xbf16>
    %cst = arith.constant dense<0.000000e+00> : vector<16x256xf32>
    %31 = tpu.matmul %28, %30, %cst {dimension_numbers = #tpu.dot_dimension_numbers<[1], [0], [0], [1], [0, 0, 1, 1], [], []>} : vector<16x256xbf16>, vector<256x256xbf16>, vector<16x256xf32> -> vector<16x256xf32>
    %c0_18 = arith.constant 0 : index
    %c0_19 = arith.constant 0 : index
    %c0_20 = arith.constant 0 : index
    %32 = vector.load %arg5[%c0_18, %c0_19, %c0_20] : memref<1x1x256xf32, #tpu.memory_space<vmem>>, vector<1x1x256xf32>
    %33 = vector.shape_cast %32 : vector<1x1x256xf32> to vector<1x256xf32>
    %34 = vector.broadcast %33 : vector<1x256xf32> to vector<16x256xf32>
    %35 = arith.addf %31, %34 : vector<16x256xf32>
    %cst_21 = arith.constant 5.000000e-01 : f32
    %36 = vector.broadcast %cst_21 : f32 to vector<16x256xf32>
    %37 = arith.mulf %36, %35 : vector<16x256xf32>
    %cst_22 = arith.constant 0.707106769 : f32
    %38 = vector.broadcast %cst_22 : f32 to vector<16x256xf32>
    %39 = arith.mulf %35, %38 : vector<16x256xf32>
    %40 = math.erf %39 : vector<16x256xf32>
    %cst_23 = arith.constant 1.000000e+00 : f32
    %41 = vector.broadcast %cst_23 : f32 to vector<16x256xf32>
    %42 = arith.addf %41, %40 : vector<16x256xf32>
    %43 = arith.mulf %37, %42 : vector<16x256xf32>
    %c256_i32 = arith.constant 256 : i32
    %44 = arith.muli %arg2, %c256_i32 : i32
    %45 = tpu.assume_multiple %44, 256 : i32
    %c2_i32_24 = arith.constant 2 : i32
    %46 = arith.cmpi slt, %arg1, %c2_i32_24 : i32
    %47 = arith.extui %46 : i1 to i32
    %c0_i32_25 = arith.constant 0 : i32
    %48 = arith.cmpi ne, %47, %c0_i32_25 : i32
    scf.if %48 {
      %52 = arith.truncf %43 : vector<16x256xf32> to vector<16x256xbf16>
      %53 = arith.index_cast %25 : i32 to index
      %c0_28 = arith.constant 0 : index
      %54 = arith.index_cast %45 : i32 to index
      %55 = vector.load %arg7[%53, %c0_28, %54] : memref<2x16x256xbf16, #tpu.memory_space<vmem>>, vector<1x16x256xbf16>
      %56 = vector.shape_cast %55 : vector<1x16x256xbf16> to vector<16x256xbf16>
      %57 = vector.shape_cast %52 : vector<16x256xbf16> to vector<1x16x256xbf16>
      tpu.vector_store %arg7[%53, %c0_28, %54], %57 {strides = array<i32>} : memref<2x16x256xbf16, #tpu.memory_space<vmem>>, vector<1x16x256xbf16>,
    } else {
    }
    %c2_i32_26 = arith.constant 2 : i32
    %49 = arith.cmpi eq, %arg1, %c2_i32_26 : i32
    %50 = arith.extui %49 : i1 to i32
    %c0_i32_27 = arith.constant 0 : i32
    %51 = arith.cmpi ne, %50, %c0_i32_27 : i32
    scf.if %51 {
      %c0_28 = arith.constant 0 : index
      %52 = arith.index_cast %45 : i32 to index
      %53 = vector.load %arg6[%c0_28, %52] : memref<16x256xf32, #tpu.memory_space<vmem>>, vector<16x256xf32>
      tpu.vector_store %arg6[%c0_28, %52], %43 {strides = array<i32>} : memref<16x256xf32, #tpu.memory_space<vmem>>, vector<16x256xf32>,
    } else {
    }
    return
  }
  func.func @transform_0(%arg0: i32, %arg1: i32, %arg2: i32) -> (i32, i32) {
    %c0_i32 = arith.constant 0 : i32
    %c0_i32_0 = arith.constant 0 : i32
    return %arg0, %c0_i32 : i32, i32
  }
  func.func @transform_1(%arg0: i32, %arg1: i32, %arg2: i32) -> (i32, i32, i32, i32) {
    %c0_i32 = arith.constant 0 : i32
    %c0_i32_0 = arith.constant 0 : i32
    %c0_i32_1 = arith.constant 0 : i32
    return %arg1, %arg2, %c0_i32, %c0_i32_0 : i32, i32, i32, i32
  }
  func.func @transform_2(%arg0: i32, %arg1: i32, %arg2: i32) -> (i32, i32, i32) {
    %c0_i32 = arith.constant 0 : i32
    %c0_i32_0 = arith.constant 0 : i32
    return %arg1, %c0_i32, %arg2 : i32, i32, i32
  }
  func.func @transform_3(%arg0: i32, %arg1: i32, %arg2: i32) -> (i32, i32) {
    %c0_i32 = arith.constant 0 : i32
    %c0_i32_0 = arith.constant 0 : i32
    return %arg0, %c0_i32 : i32, i32
  }
}

</mosaic_0001>

<llo_original>
// kernel: tpu_custom_call.1
$region0: #{tpu_custom_call.1}
  #allocation0 [shape = 'u32[]', space=smem, size = 0x4, offset = 0x4, fixed_abs, tag = 'smem constant byte address 0x4 - core index']
  #allocation1 [shape = 'u32[72,128]{1,0:T(1,128)}', space=vmem, size = 0x9000, scoped, tag = 'internal scratch']
  #allocation2 [shape = 'bf16[2,16,256]{2,1,0:T(8,128)(2,1)}', space=vmem, size = 0x4000, scoped, tag = 'scratch operand']
  %s0 = inlined_call_operand.hbm [shape: f32[16,256], index: 0, kind: input, shape index: {}]
  %s1 = inlined_call_operand.hbm [shape: bf16[3,1,256,256], index: 1, kind: input, shape index: {}]
  %s2 = inlined_call_operand.hbm [shape: f32[3,1,256], index: 2, kind: input, shape index: {}]
  %s3 = inlined_call_operand.hbm [shape: f32[16,256], index: 3, kind: output, shape index: {}]
  %s4 = sld [smem:[#allocation0]]
  $region69: #{tpu_custom_call.1} parent=0
    _
  %s6 = ssub.s32 1, %s4
  %s7 = scalar_select 0, %s6, %s4
  $region1: #{tpu_custom_call.1} parent=0
    #allocation3 [shape = 'u8[16384]{0}', space=vmem, size = 0x4000, scoped, tag = 'input window, operand 0, single buffered']
    #allocation4 [shape = 's32[2]{0}', space=sflag, size = 0x8, scoped, tag = 'scoped memory for tpu_custom_call.1']
    #allocation5 [shape = 's32[2]{0}', space=sflag, size = 0x8, scoped, tag = 'scoped memory for tpu_custom_call.1']
    #allocation6 [shape = 'u8[262144]{0}', space=vmem, size = 0x40000, scoped, tag = 'input window, operand 1']
    #allocation7 [shape = 's32[2]{0}', space=sflag, size = 0x8, scoped, tag = 'scoped memory for tpu_custom_call.1']
    #allocation8 [shape = 'u8[2048]{0}', space=vmem, size = 0x800, scoped, tag = 'input window, operand 2']
    #allocation9 [shape = 'u8[16384]{0}', space=vmem, size = 0x4000, scoped, tag = 'output window, operand 0, single buffered']
    %8 = vsyncpa [#allocation4], 0
    %9 = vsyncpa [#allocation7], 0
    %s10 = scalar_lea.sflag [#allocation7], 1
    %11 = vsyncpa %s10, 0
    %12 = vsyncpa [#allocation5], 0
    loop: start=0, step=1, limit=5
    $region2: #{tpu_custom_call.1} parent=1 // loop_pre_header
      _
    $region3: #{tpu_custom_call.1} parent=1 // loop_header
      %s14 = sphi 0, %s18
      %p15 = scmp.ge.s32.totalorder %s14, 5
      %s21 = sphi 0, %s40
      %s22 = sphi 0, %s36
      %s23 = sphi 0, %s32
      %s24 = sphi 0, %s21
      %s25 = sphi 0, %s22
      %s26 = sphi 0, %s23
      %s27 = sphi 0, %s24
      %s28 = sphi 0, %s25
      %s29 = sphi 0, %s26
      %s43 = sphi 0, %s45
      %s46 = sphi 0, %s43
      %s47 = sphi 0, %s46
      %s63 = sphi 0, %s47
      %s71 = sphi 0, %s73
      %s74 = sphi 0, %s71
      %s75 = sphi 0, %s74
      %s91 = sphi 0, %s75
      %s99 = sphi 0, %s101
      %s102 = sphi 0, %s99
      %s103 = sphi 0, %s102
      %s119 = sphi 0, %s103
      %s125 = sphi 0, %s127
      %s128 = sphi 0, %s125
      %s129 = sphi 0, %s128
      %s145 = sphi 0, %s129
    $region4: #{tpu_custom_call.1} parent=1 // loop_header_branch
      %17 = sbr.rel (%p15) target = $region8
    $region5: #{tpu_custom_call.1} parent=1 // loop_body
      %s19 = ssub.s32 %s14, 1
      %s20 = ssub.s32 %s14, 2
      %s30 = sadd.s32 1, %s23
      %p31 = scmp.ge.s32.totalorder %s30, 1
      %s32 = scalar_select %p31, 0, %s30
      %s33 = sadd.s32 1, %s22
      %s34 = scalar_select %p31, %s33, %s22
      %p35 = scmp.ge.s32.totalorder %s34, 3
      %s36 = scalar_select %p35, 0, %s34
      %s37 = sadd.s32 1, %s21
      %s38 = scalar_select %p35, %s37, %s21
      %p39 = scmp.ge.s32.totalorder %s38, 1
      %s40 = scalar_select %p39, 0, %s38
      %s41 = ssub.s32 %s21, %s40
      %p42 = scmp.eq.s32.totalorder %s41, 0
      %s44 = sadd.s32 %s43, 1
      %s45 = scalar_select %p42, %s43, %s44
      %p48 = pneg %p42
      %p49 = scmp.eq.s32.totalorder %s14, 2
      %p50 = por %p48, %p49
      %p51 = scmp.ne.s32.totalorder %s43, %s46
      %p52 = scmp.eq.s32.totalorder %s14, 0
      %p53 = por %p51, %p52
      %p54 = scmp.ne.s32.totalorder %s43, %s46
      %p55 = scmp.eq.s32.totalorder %s19, 2
      %p56 = por %p54, %p55
      %p57 = scmp.ne.s32.totalorder %s46, %s47
      %p58 = scmp.eq.s32.totalorder %s19, 0
      %p59 = por %p57, %p58
      %p60 = scmp.ne.s32.totalorder %s46, %s47
      %p61 = scmp.eq.s32.totalorder %s20, 2
      %p62 = por %p60, %p61
      %p64 = scmp.ne.s32.totalorder %s47, %s63
      %p65 = scmp.eq.s32.totalorder %s20, 0
      %p66 = por %p64, %p65
      %s67 = ssub.s32 %s22, %s36
      %s68 = ssub.s32 %s23, %s32
      %s69 = sor.u32 %s67, %s68
      %p70 = scmp.eq.s32.totalorder %s69, 0
      %s72 = sadd.s32 %s71, 1
      %s73 = scalar_select %p70, %s71, %s72
      %p76 = pneg %p70
      %p77 = scmp.eq.s32.totalorder %s14, 2
      %p78 = por %p76, %p77
      %p79 = scmp.ne.s32.totalorder %s71, %s74
      %p80 = scmp.eq.s32.totalorder %s14, 0
      %p81 = por %p79, %p80
      %p82 = scmp.ne.s32.totalorder %s71, %s74
      %p83 = scmp.eq.s32.totalorder %s19, 2
      %p84 = por %p82, %p83
      %p85 = scmp.ne.s32.totalorder %s74, %s75
      %p86 = scmp.eq.s32.totalorder %s19, 0
      %p87 = por %p85, %p86
      %p88 = scmp.ne.s32.totalorder %s74, %s75
      %p89 = scmp.eq.s32.totalorder %s20, 2
      %p90 = por %p88, %p89
      %p92 = scmp.ne.s32.totalorder %s75, %s91
      %p93 = scmp.eq.s32.totalorder %s20, 0
      %p94 = por %p92, %p93
      %s95 = ssub.s32 %s22, %s36
      %s96 = ssub.s32 %s23, %s32
      %s97 = sor.u32 %s95, %s96
      %p98 = scmp.eq.s32.totalorder %s97, 0
      %s100 = sadd.s32 %s99, 1
      %s101 = scalar_select %p98, %s99, %s100
      %p104 = pneg %p98
      %p105 = scmp.eq.s32.totalorder %s14, 2
      %p106 = por %p104, %p105
      %p107 = scmp.ne.s32.totalorder %s99, %s102
      %p108 = scmp.eq.s32.totalorder %s14, 0
      %p109 = por %p107, %p108
      %p110 = scmp.ne.s32.totalorder %s99, %s102
      %p111 = scmp.eq.s32.totalorder %s19, 2
      %p112 = por %p110, %p111
      %p113 = scmp.ne.s32.totalorder %s102, %s103
      %p114 = scmp.eq.s32.totalorder %s19, 0
      %p115 = por %p113, %p114
      %p116 = scmp.ne.s32.totalorder %s102, %s103
      %p117 = scmp.eq.s32.totalorder %s20, 2
      %p118 = por %p116, %p117
      %p120 = scmp.ne.s32.totalorder %s103, %s119
      %p121 = scmp.eq.s32.totalorder %s20, 0
      %p122 = por %p120, %p121
      %s123 = ssub.s32 %s21, %s40
      %p124 = scmp.eq.s32.totalorder %s123, 0
      %s126 = sadd.s32 %s125, 1
      %s127 = scalar_select %p124, %s125, %s126
      %p130 = pneg %p124
      %p131 = scmp.eq.s32.totalorder %s14, 2
      %p132 = por %p130, %p131
      %p133 = scmp.ne.s32.totalorder %s125, %s128
      %p134 = scmp.eq.s32.totalorder %s14, 0
      %p135 = por %p133, %p134
      %p136 = scmp.ne.s32.totalorder %s125, %s128
      %p137 = scmp.eq.s32.totalorder %s19, 2
      %p138 = por %p136, %p137
      %p139 = scmp.ne.s32.totalorder %s128, %s129
      %p140 = scmp.eq.s32.totalorder %s19, 0
      %p141 = por %p139, %p140
      %p142 = scmp.ne.s32.totalorder %s128, %s129
      %p143 = scmp.eq.s32.totalorder %s20, 2
      %p144 = por %p142, %p143
      %p146 = scmp.ne.s32.totalorder %s129, %s145
      %p147 = scmp.eq.s32.totalorder %s20, 0
      %p148 = por %p146, %p147
      %p149 = scmp.le.s32.totalorder 1, %s14
      %p150 = scmp.lt.s32.totalorder %s14, 4
      %p151 = pnand %p149, %p150
      %p152 = pneg %p151
      // Predicated region
      $region9: #{tpu_custom_call.1} parent=5 // pred_check
        _
      $region10: #{tpu_custom_call.1} parent=5 // pred_check_branch
        %154 = sbr.rel (%p151) target = $region12
      $region11: #{tpu_custom_call.1} parent=5 // pred_region
        %s155 = ssub.s32 %s14, 1
        // Predicated region
        $region13: #{tpu_custom_call.1} parent=11 // pred_check
          %p156 = pneg %p59
        $region14: #{tpu_custom_call.1} parent=11 // pred_check_branch
          %158 = sbr.rel (%p156) target = $region16
        $region15: #{tpu_custom_call.1} parent=11 // pred_region
          %s159 = smul.u32 2, %s24
          %161 = vsyncadd [#allocation4], 0
          %s162 = smul.addr %s159, 2
          %s163 = smul.addr %s162, 8
          %s164 = scalar_lea.hbm %s0, %s163
          %s165 = sshll.u32 %s164, 4
          %s166 = int_to_ptr.hbm [resolvable:$true] %s165
          %s167 = sshll.u32 [#allocation3], 4
          %s168 = int_to_ptr.vmem [resolvable:$true] %s167
          %173 = dma.hbm_to_vmem [thread:$0]  %s166, 512, %s168, [#allocation4], 256, 256, 16
        $region16: #{tpu_custom_call.1} parent=11 // pred_fallthru
          _
      $region12: #{tpu_custom_call.1} parent=5 // pred_fallthru
        _
      %p174 = scmp.lt.s32.totalorder %s14, 3
      // Predicated region
      $region17: #{tpu_custom_call.1} parent=5 // pred_check
        %p175 = pneg %p174
      $region18: #{tpu_custom_call.1} parent=5 // pred_check_branch
        %177 = sbr.rel (%p175) target = $region20
      $region19: #{tpu_custom_call.1} parent=5 // pred_region
        // Predicated region
        $region21: #{tpu_custom_call.1} parent=19 // pred_check
          %p178 = pneg %p81
        $region22: #{tpu_custom_call.1} parent=19 // pred_check_branch
          %180 = sbr.rel (%p178) target = $region24
        $region23: #{tpu_custom_call.1} parent=19 // pred_region
          %s181 = sand.u32 %s14, 1
          %s182 = scalar_lea.sflag [#allocation7], %s181
          %s183 = sand.u32 %s71, 1
          %s184 = smul.addr %s183, 256
          %s185 = scalar_lea.vmem [#allocation6], %s184
          %187 = vsyncadd %s182, 0
          %s188 = smul.addr %s23, 64
          %s189 = smul.addr %s22, 64
          %s190 = sadd.s32 %s188, %s189
          %s191 = smul.addr %s190, 4
          %s192 = scalar_lea.hbm %s1, %s191
          %s193 = sshll.u32 %s192, 4
          %s194 = int_to_ptr.hbm [resolvable:$true] %s193
          %s195 = sshll.u32 %s185, 4
          %s196 = int_to_ptr.vmem [resolvable:$true] %s195
          %201 = dma.hbm_to_vmem [thread:$0]  %s194, 4096, %s196, %s182, 128, 128, 8
        $region24: #{tpu_custom_call.1} parent=19 // pred_fallthru
          _
        // Predicated region
        $region25: #{tpu_custom_call.1} parent=19 // pred_check
          %p202 = pneg %p109
        $region26: #{tpu_custom_call.1} parent=19 // pred_check_branch
          %204 = sbr.rel (%p202) target = $region28
        $region27: #{tpu_custom_call.1} parent=19 // pred_region
          %s205 = sand.u32 %s14, 1
          %s206 = scalar_lea.sflag [#allocation7], %s205
          %s207 = sand.u32 %s99, 1
          %s208 = smul.addr %s207, 2
          %s209 = scalar_lea.vmem [#allocation8], %s208
          %s210 = smul.u32 2, %s23
          %212 = vsyncadd %s206, 0
          %s213 = smul.addr %s22, 2
          %s214 = sadd.s32 %s210, %s213
          %s215 = scalar_lea.hbm %s2, %s214
          %s217 = sshll.u32 %s215, 4
          %s218 = int_to_ptr.hbm [resolvable:$true] %s217
          %s219 = sshll.u32 %s209, 4
          %s220 = int_to_ptr.vmem [resolvable:$true] %s219
          %222 = dma.hbm_to_vmem [thread:$0]  %s218, 32, %s220, %s206
        $region28: #{tpu_custom_call.1} parent=19 // pred_fallthru
          _
      $region20: #{tpu_custom_call.1} parent=5 // pred_fallthru
        _
      %p223 = scmp.le.s32.totalorder 1, %s14
      %p224 = scmp.lt.s32.totalorder %s14, 4
      %p225 = pnand %p223, %p224
      %p226 = pneg %p225
      // Predicated region
      $region29: #{tpu_custom_call.1} parent=5 // pred_check
        _
      $region30: #{tpu_custom_call.1} parent=5 // pred_check_branch
        %228 = sbr.rel (%p225) target = $region32
      $region31: #{tpu_custom_call.1} parent=5 // pred_region
        %s229 = ssub.s32 %s14, 1
        // Predicated region
        $region33: #{tpu_custom_call.1} parent=31 // pred_check
          %p230 = pneg %p59
        $region34: #{tpu_custom_call.1} parent=31 // pred_check_branch
          %232 = sbr.rel (%p230) target = $region36
        $region35: #{tpu_custom_call.1} parent=31 // pred_region
          %234 = dma.done [#allocation4], 512
        $region36: #{tpu_custom_call.1} parent=31 // pred_fallthru
          _
        %s235 = sand.u32 %s19, 1
        %s236 = scalar_lea.sflag [#allocation7], %s235
        %s237 = sand.u32 %s74, 1
        %s238 = smul.addr %s237, 256
        %s239 = scalar_lea.vmem [#allocation6], %s238
        // Predicated region
        $region37: #{tpu_custom_call.1} parent=31 // pred_check
          %p240 = pneg %p87
        $region38: #{tpu_custom_call.1} parent=31 // pred_check_branch
          %242 = sbr.rel (%p240) target = $region40
        $region39: #{tpu_custom_call.1} parent=31 // pred_region
          %244 = dma.done %s236, 4096
        $region40: #{tpu_custom_call.1} parent=31 // pred_fallthru
          _
        %s245 = sand.u32 %s19, 1
        %s246 = scalar_lea.sflag [#allocation7], %s245
        %s247 = sand.u32 %s102, 1
        %s248 = smul.addr %s247, 2
        %s249 = scalar_lea.vmem [#allocation8], %s248
        // Predicated region
        $region41: #{tpu_custom_call.1} parent=31 // pred_check
          %p250 = pneg %p115
        $region42: #{tpu_custom_call.1} parent=31 // pred_check_branch
          %252 = sbr.rel (%p250) target = $region44
        $region43: #{tpu_custom_call.1} parent=31 // pred_region
          %254 = dma.done %s246, 32
        $region44: #{tpu_custom_call.1} parent=31 // pred_fallthru
          _
        %p255 = pneg %p59
        %p256 = pneg %p56
        %s257 = sand.u32 %s19, 1
        %s258 = scalar_lea.sflag [#allocation7], %s257
        %s259 = sand.u32 %s74, 1
        %s260 = smul.addr %s259, 256
        %s261 = scalar_lea.vmem [#allocation6], %s260
        %p262 = pneg %p87
        %p263 = pneg %p84
        %s264 = sand.u32 %s19, 1
        %s265 = scalar_lea.sflag [#allocation7], %s264
        %s266 = sand.u32 %s102, 1
        %s267 = smul.addr %s266, 2
        %s268 = scalar_lea.vmem [#allocation8], %s267
        %p269 = pneg %p115
        %p270 = pneg %p112
        %p271 = pneg %p141
        %p272 = pneg %p138
        %s273 = smul.u32 2, %s24
        %s274 = smul.u32 2, %s26
        %s275 = smul.u32 2, %s24
        %p276 = scmp.eq.s32.totalorder %s25, 0
        %p277 = scmp.eq.s32.totalorder %s26, 0
        %p278 = pnand %p276, %p277
        %p279 = pneg %p278
        // Predicated region
        $region45: #{tpu_custom_call.1} parent=31 // pred_check
          _
        $region46: #{tpu_custom_call.1} parent=31 // pred_check_branch
          %281 = sbr.rel (%p278) target = $region48
        $region47: #{tpu_custom_call.1} parent=31 // pred_region
          %v282 = vld [vmem:[#allocation3] sm:$0xff]
          %v283 = vld [vmem:[#allocation3 + $0x8] sm:$0xff]
          %v284 = vld [vmem:[#allocation3 + $0x10] sm:$0xff]
          %v285 = vld [vmem:[#allocation3 + $0x18] sm:$0xff]
          %v286 = vpack.c.bf16 %v283, %v282
          %v287 = vpack.c.bf16 %v285, %v284
          %288 = vst [vmem:[#allocation2] sm:$0xff] %v286
          %289 = vst [vmem:[#allocation2 + $0x8] sm:$0xff] %v287
        $region48: #{tpu_custom_call.1} parent=31 // pred_fallthru
          _
        %p290 = scmp.lt.s32.totalorder %s25, 0
        %s291 = ssub.s32 0, %s25
        %s292 = scalar_select %p290, %s291, %s25
        %s293 = sand.u32 %s292, 1
        %s294 = ssub.s32 0, %s293
        %s295 = scalar_select %p290, %s294, %s293
        %p296 = scmp.ne.s32.totalorder %s295, 0
        %p297 = scmp.lt.s32.totalorder %s295, 0
        %p298 = pnand %p297, %p296
        %p299 = pneg %p298
        %s300 = sadd.s32 %s295, 2
        %s301 = scalar_select %p299, %s300, %s295
        %s302 = sadd.s32 %s25, 1
        %p303 = scmp.lt.s32.totalorder %s302, 0
        %s304 = ssub.s32 0, %s302
        %s305 = scalar_select %p303, %s304, %s302
        %s306 = sand.u32 %s305, 1
        %s307 = ssub.s32 0, %s306
        %s308 = scalar_select %p303, %s307, %s306
        %p309 = scmp.ne.s32.totalorder %s308, 0
        %p310 = scmp.lt.s32.totalorder %s308, 0
        %p311 = pnand %p310, %p309
        %p312 = pneg %p311
        %s313 = sadd.s32 %s308, 2
        %s314 = scalar_select %p312, %s313, %s308
        %s315 = smul.u32 %s301, 4
        %s316 = smul.addr %s315, 4
        %s317 = scalar_lea.vmem [#allocation2], %s316
        %v318 = vld [vmem:[%s317] sm:$0xff]
        %v319 = vld [vmem:[%s317 + $0x8] sm:$0xff]
        %v320 = vld [vmem:[%s239] sm:$0xff]
        %v321 = vld [vmem:[%s239 + $0x8] sm:$0xff]
        %v322 = vld [vmem:[%s239 + $0x10] sm:$0xff]
        %v323 = vld [vmem:[%s239 + $0x18] sm:$0xff]
        %v324 = vld [vmem:[%s239 + $0x20] sm:$0xff]
        %v325 = vld [vmem:[%s239 + $0x28] sm:$0xff]
        %v326 = vld [vmem:[%s239 + $0x30] sm:$0xff]
        %v327 = vld [vmem:[%s239 + $0x38] sm:$0xff]
        %v328 = vld [vmem:[%s239 + $0x40] sm:$0xff]
        %v329 = vld [vmem:[%s239 + $0x48] sm:$0xff]
        %v330 = vld [vmem:[%s239 + $0x50] sm:$0xff]
        %v331 = vld [vmem:[%s239 + $0x58] sm:$0xff]
        %v332 = vld [vmem:[%s239 + $0x60] sm:$0xff]
        %v333 = vld [vmem:[%s239 + $0x68] sm:$0xff]
        %v334 = vld [vmem:[%s239 + $0x70] sm:$0xff]
        %v335 = vld [vmem:[%s239 + $0x78] sm:$0xff]
        %v336 = vld [vmem:[%s239 + $0x80] sm:$0xff]
        %v337 = vld [vmem:[%s239 + $0x88] sm:$0xff]
        %v338 = vld [vmem:[%s239 + $0x90] sm:$0xff]
        %v339 = vld [vmem:[%s239 + $0x98] sm:$0xff]
        %v340 = vld [vmem:[%s239 + $0xa0] sm:$0xff]
        %v341 = vld [vmem:[%s239 + $0xa8] sm:$0xff]
        %v342 = vld [vmem:[%s239 + $0xb0] sm:$0xff]
        %v343 = vld [vmem:[%s239 + $0xb8] sm:$0xff]
        %v344 = vld [vmem:[%s239 + $0xc0] sm:$0xff]
        %v345 = vld [vmem:[%s239 + $0xc8] sm:$0xff]
        %v346 = vld [vmem:[%s239 + $0xd0] sm:$0xff]
        %v347 = vld [vmem:[%s239 + $0xd8] sm:$0xff]
        %v348 = vld [vmem:[%s239 + $0xe0] sm:$0xff]
        %v349 = vld [vmem:[%s239 + $0xe8] sm:$0xff]
        %v350 = vld [vmem:[%s239 + $0xf0] sm:$0xff]
        %v351 = vld [vmem:[%s239 + $0xf8] sm:$0xff]
        %v352 = vld [vmem:[%s249] sm:$0x3]
        %v354 = vperm.slane %v352, 0
        %v355 = vperm.slane %v352, 1
        %v360 = vunpack.c.l.b16 %v318
        %v361 = vunpack.c.h.b16 %v318
        %v362 = vunpack.c.l.b16 %v319
        %v363 = vunpack.c.h.b16 %v319
        %v364 = vpack.c.b16 %v362, %v360
        %v365 = vpack.c.b16 %v363, %v361
        %v400 = vunpack.c.l.b16 %v320
        %v401 = vunpack.c.h.b16 %v320
        %v402 = vunpack.c.l.b16 %v321
        %v403 = vunpack.c.h.b16 %v321
        %v404 = vunpack.c.l.b16 %v322
        %v405 = vunpack.c.h.b16 %v322
        %v406 = vunpack.c.l.b16 %v323
        %v407 = vunpack.c.h.b16 %v323
        %v408 = vunpack.c.l.b16 %v324
        %v409 = vunpack.c.h.b16 %v324
        %v410 = vunpack.c.l.b16 %v325
        %v411 = vunpack.c.h.b16 %v325
        %v412 = vunpack.c.l.b16 %v326
        %v413 = vunpack.c.h.b16 %v326
        %v414 = vunpack.c.l.b16 %v327
        %v415 = vunpack.c.h.b16 %v327
        %v416 = vunpack.c.l.b16 %v328
        %v417 = vunpack.c.h.b16 %v328
        %v418 = vunpack.c.l.b16 %v329
        %v419 = vunpack.c.h.b16 %v329
        %v420 = vunpack.c.l.b16 %v330
        %v421 = vunpack.c.h.b16 %v330
        %v422 = vunpack.c.l.b16 %v331
        %v423 = vunpack.c.h.b16 %v331
        %v424 = vunpack.c.l.b16 %v332
        %v425 = vunpack.c.h.b16 %v332
        %v426 = vunpack.c.l.b16 %v333
        %v427 = vunpack.c.h.b16 %v333
        %v428 = vunpack.c.l.b16 %v334
        %v429 = vunpack.c.h.b16 %v334
        %v430 = vunpack.c.l.b16 %v335
        %v431 = vunpack.c.h.b16 %v335
        %v432 = vunpack.c.l.b16 %v336
        %v433 = vunpack.c.h.b16 %v336
        %v434 = vunpack.c.l.b16 %v337
        %v435 = vunpack.c.h.b16 %v337
        %v436 = vunpack.c.l.b16 %v338
        %v437 = vunpack.c.h.b16 %v338
        %v438 = vunpack.c.l.b16 %v339
        %v439 = vunpack.c.h.b16 %v339
        %v440 = vunpack.c.l.b16 %v340
        %v441 = vunpack.c.h.b16 %v340
        %v442 = vunpack.c.l.b16 %v341
        %v443 = vunpack.c.h.b16 %v341
        %v444 = vunpack.c.l.b16 %v342
        %v445 = vunpack.c.h.b16 %v342
        %v446 = vunpack.c.l.b16 %v343
        %v447 = vunpack.c.h.b16 %v343
        %v448 = vunpack.c.l.b16 %v344
        %v449 = vunpack.c.h.b16 %v344
        %v450 = vunpack.c.l.b16 %v345
        %v451 = vunpack.c.h.b16 %v345
        %v452 = vunpack.c.l.b16 %v346
        %v453 = vunpack.c.h.b16 %v346
        %v454 = vunpack.c.l.b16 %v347
        %v455 = vunpack.c.h.b16 %v347
        %v456 = vunpack.c.l.b16 %v348
        %v457 = vunpack.c.h.b16 %v348
        %v458 = vunpack.c.l.b16 %v349
        %v459 = vunpack.c.h.b16 %v349
        %v460 = vunpack.c.l.b16 %v350
        %v461 = vunpack.c.h.b16 %v350
        %v462 = vunpack.c.l.b16 %v351
        %v463 = vunpack.c.h.b16 %v351
        %v464 = vpack.c.b16 %v402, %v400
        %v465 = vpack.c.b16 %v403, %v401
        %v466 = vpack.c.b16 %v406, %v404
        %v467 = vpack.c.b16 %v407, %v405
        %v468 = vpack.c.b16 %v410, %v408
        %v469 = vpack.c.b16 %v411, %v409
        %v470 = vpack.c.b16 %v414, %v412
        %v471 = vpack.c.b16 %v415, %v413
        %v472 = vpack.c.b16 %v418, %v416
        %v473 = vpack.c.b16 %v419, %v417
        %v474 = vpack.c.b16 %v422, %v420
        %v475 = vpack.c.b16 %v423, %v421
        %v476 = vpack.c.b16 %v426, %v424
        %v477 = vpack.c.b16 %v427, %v425
        %v478 = vpack.c.b16 %v430, %v428
        %v479 = vpack.c.b16 %v431, %v429
        %v480 = vpack.c.b16 %v434, %v432
        %v481 = vpack.c.b16 %v435, %v433
        %v482 = vpack.c.b16 %v438, %v436
        %v483 = vpack.c.b16 %v439, %v437
        %v484 = vpack.c.b16 %v442, %v440
        %v485 = vpack.c.b16 %v443, %v441
        %v486 = vpack.c.b16 %v446, %v444
        %v487 = vpack.c.b16 %v447, %v445
        %v488 = vpack.c.b16 %v450, %v448
        %v489 = vpack.c.b16 %v451, %v449
        %v490 = vpack.c.b16 %v454, %v452
        %v491 = vpack.c.b16 %v455, %v453
        %v492 = vpack.c.b16 %v458, %v456
        %v493 = vpack.c.b16 %v459, %v457
        %v494 = vpack.c.b16 %v462, %v460
        %v495 = vpack.c.b16 %v463, %v461
        %528 = vmatpush.bf16.msra.mxu0 %v478
        %529 = vmatpush.bf16.msra.mxu0 %v476
        %530 = vmatpush.bf16.msra.mxu0 %v474
        %531 = vmatpush.bf16.msra.mxu0 %v472
        %532 = vmatpush.bf16.msra.mxu0 %v470
        %533 = vmatpush.bf16.msra.mxu0 %v468
        %534 = vmatpush.bf16.msra.mxu0 %v466
        %535 = vmatpush.bf16.msra.mxu0 %v464
        %536 = vmatmul.bf16.gmra.mxu0 %v364
        %v537 = vpop.f32.mrf.mxu0
        %v538 = vadd.f32 %v354, %v537
        %v539 = vpop.f32.mrf.mxu0
        %v540 = vadd.f32 %v354, %v539
        %541 = vdwg.mxu0
        %542 = vmatpush.bf16.msra.mxu0 %v494
        %543 = vmatpush.bf16.msra.mxu0 %v492
        %544 = vmatpush.bf16.msra.mxu0 %v490
        %545 = vmatpush.bf16.msra.mxu0 %v488
        %546 = vmatpush.bf16.msra.mxu0 %v486
        %547 = vmatpush.bf16.msra.mxu0 %v484
        %548 = vmatpush.bf16.msra.mxu0 %v482
        %549 = vmatpush.bf16.msra.mxu0 %v480
        %550 = vmatmul.bf16.gmra.mxu0 %v365
        %v551 = vpop.f32.mrf.mxu0
        %v552 = vadd.f32 %v538, %v551
        %v553 = vpop.f32.mrf.mxu0
        %v554 = vadd.f32 %v540, %v553
        %555 = vdwg.mxu0
        %556 = vmatpush.bf16.msra.mxu0 %v479
        %557 = vmatpush.bf16.msra.mxu0 %v477
        %558 = vmatpush.bf16.msra.mxu0 %v475
        %559 = vmatpush.bf16.msra.mxu0 %v473
        %560 = vmatpush.bf16.msra.mxu0 %v471
        %561 = vmatpush.bf16.msra.mxu0 %v469
        %562 = vmatpush.bf16.msra.mxu0 %v467
        %563 = vmatpush.bf16.msra.mxu0 %v465
        %564 = vmatmul.bf16.gmra.mxu0 %v364
        %v565 = vpop.f32.mrf.mxu0
        %v566 = vadd.f32 %v355, %v565
        %v567 = vpop.f32.mrf.mxu0
        %v568 = vadd.f32 %v355, %v567
        %569 = vdwg.mxu0
        %570 = vmatpush.bf16.msra.mxu0 %v495
        %571 = vmatpush.bf16.msra.mxu0 %v493
        %572 = vmatpush.bf16.msra.mxu0 %v491
        %573 = vmatpush.bf16.msra.mxu0 %v489
        %574 = vmatpush.bf16.msra.mxu0 %v487
        %575 = vmatpush.bf16.msra.mxu0 %v485
        %576 = vmatpush.bf16.msra.mxu0 %v483
        %577 = vmatpush.bf16.msra.mxu0 %v481
        %578 = vmatmul.bf16.gmra.mxu0 %v365
        %v579 = vpop.f32.mrf.mxu0
        %v580 = vadd.f32 %v566, %v579
        %v581 = vpop.f32.mrf.mxu0
        %v582 = vadd.f32 %v568, %v581
        %583 = vdwg.mxu0
        %v584 = vmul.f32 %v552, 0.5
        %v585 = vmul.f32 %v580, 0.5
        %v586 = vmul.f32 %v554, 0.5
        %v587 = vmul.f32 %v582, 0.5
        %v588 = vmul.f32 %v552, 0.70710677
        %v589 = vmul.f32 %v580, 0.70710677
        %v590 = vmul.f32 %v554, 0.70710677
        %v591 = vmul.f32 %v582, 0.70710677
        %v592 = vmul.f32 %v588, %v588
        %v593 = vmin.f32 16.0, %v592
        %v594 = vmul.f32 %v593, 2.1237322e-06
        %v595 = vadd.f32 %v594, 0.00028619796
        %v596 = vmul.f32 %v593, %v595
        %v597 = vadd.f32 %v596, 0.0036580483
        %v598 = vmul.f32 %v593, %v597
        %v599 = vadd.f32 %v598, 0.05243302
        %v600 = vmul.f32 %v593, %v599
        %v601 = vadd.f32 %v600, 0.18741608
        %v602 = vmul.f32 %v593, %v601
        %v603 = vadd.f32 %v602, 1.1283791
        %v604 = vmul.f32 %v588, %v603
        %v605 = vmul.f32 %v593, 3.8918573e-05
        %v606 = vadd.f32 %v605, 0.001143296
        %v607 = vmul.f32 %v593, %v606
        %v608 = vadd.f32 %v607, 0.014752088
        %v609 = vmul.f32 %v593, %v608
        %v610 = vadd.f32 %v609, 0.112945676
        %v611 = vmul.f32 %v593, %v610
        %v612 = vadd.f32 %v611, 0.4994258
        %v613 = vmul.f32 %v593, %v612
        %v614 = vadd.f32 %v613, 1.0
        %v615 = vrcp.pop %v614
        %v616 = vmul.f32 %v614, %v615
        %v617 = vsub.f32 1.0, %v616
        %v618 = vmul.f32 %v615, %v617
        %v619 = vadd.f32 %v615, %v618
        %vm620 = vweird.f32 %v614
        %vm621 = vweird.f32 %v615
        %vm622 = vmor %vm620, %vm621
        %v623 = vsel %vm622, %v615, %v619
        %v624 = vand.u32 2147483647, %v614
        %vm625 = vcmp.eq.f32.partialorder %v624, 8.507059e+37
        %v626 = vand.u32 %v614, 2147483648
        %v627 = vor.u32 1.1754944e-38, %v626
        %v628 = vsel %vm625, %v627, %v623
        %v629 = vmul.f32 %v604, %v628
        %v630 = vmin.f32 %v629, 1.0
        %v631 = vmax.f32 %v630, -1.0
        %v632 = vmul.f32 %v589, %v589
        %v633 = vmin.f32 16.0, %v632
        %v634 = vmul.f32 %v633, 2.1237322e-06
        %v635 = vadd.f32 %v634, 0.00028619796
        %v636 = vmul.f32 %v633, %v635
        %v637 = vadd.f32 %v636, 0.0036580483
        %v638 = vmul.f32 %v633, %v637
        %v639 = vadd.f32 %v638, 0.05243302
        %v640 = vmul.f32 %v633, %v639
        %v641 = vadd.f32 %v640, 0.18741608
        %v642 = vmul.f32 %v633, %v641
        %v643 = vadd.f32 %v642, 1.1283791
        %v644 = vmul.f32 %v589, %v643
        %v645 = vmul.f32 %v633, 3.8918573e-05
        %v646 = vadd.f32 %v645, 0.001143296
        %v647 = vmul.f32 %v633, %v646
        %v648 = vadd.f32 %v647, 0.014752088
        %v649 = vmul.f32 %v633, %v648
        %v650 = vadd.f32 %v649, 0.112945676
        %v651 = vmul.f32 %v633, %v650
        %v652 = vadd.f32 %v651, 0.4994258
        %v653 = vmul.f32 %v633, %v652
        %v654 = vadd.f32 %v653, 1.0
        %v655 = vrcp.pop %v654
        %v656 = vmul.f32 %v654, %v655
        %v657 = vsub.f32 1.0, %v656
        %v658 = vmul.f32 %v655, %v657
        %v659 = vadd.f32 %v655, %v658
        %vm660 = vweird.f32 %v654
        %vm661 = vweird.f32 %v655
        %vm662 = vmor %vm660, %vm661
        %v663 = vsel %vm662, %v655, %v659
        %v664 = vand.u32 2147483647, %v654
        %vm665 = vcmp.eq.f32.partialorder %v664, 8.507059e+37
        %v666 = vand.u32 %v654, 2147483648
        %v667 = vor.u32 1.1754944e-38, %v666
        %v668 = vsel %vm665, %v667, %v663
        %v669 = vmul.f32 %v644, %v668
        %v670 = vmin.f32 %v669, 1.0
        %v671 = vmax.f32 %v670, -1.0
        %v672 = vmul.f32 %v590, %v590
        %v673 = vmin.f32 16.0, %v672
        %v674 = vmul.f32 %v673, 2.1237322e-06
        %v675 = vadd.f32 %v674, 0.00028619796
        %v676 = vmul.f32 %v673, %v675
        %v677 = vadd.f32 %v676, 0.0036580483
        %v678 = vmul.f32 %v673, %v677
        %v679 = vadd.f32 %v678, 0.05243302
        %v680 = vmul.f32 %v673, %v679
        %v681 = vadd.f32 %v680, 0.18741608
        %v682 = vmul.f32 %v673, %v681
        %v683 = vadd.f32 %v682, 1.1283791
        %v684 = vmul.f32 %v590, %v683
        %v685 = vmul.f32 %v673, 3.8918573e-05
        %v686 = vadd.f32 %v685, 0.001143296
        %v687 = vmul.f32 %v673, %v686
        %v688 = vadd.f32 %v687, 0.014752088
        %v689 = vmul.f32 %v673, %v688
        %v690 = vadd.f32 %v689, 0.112945676
        %v691 = vmul.f32 %v673, %v690
        %v692 = vadd.f32 %v691, 0.4994258
        %v693 = vmul.f32 %v673, %v692
        %v694 = vadd.f32 %v693, 1.0
        %v695 = vrcp.pop %v694
        %v696 = vmul.f32 %v694, %v695
        %v697 = vsub.f32 1.0, %v696
        %v698 = vmul.f32 %v695, %v697
        %v699 = vadd.f32 %v695, %v698
        %vm700 = vweird.f32 %v694
        %vm701 = vweird.f32 %v695
        %vm702 = vmor %vm700, %vm701
        %v703 = vsel %vm702, %v695, %v699
        %v704 = vand.u32 2147483647, %v694
        %vm705 = vcmp.eq.f32.partialorder %v704, 8.507059e+37
        %v706 = vand.u32 %v694, 2147483648
        %v707 = vor.u32 1.1754944e-38, %v706
        %v708 = vsel %vm705, %v707, %v703
        %v709 = vmul.f32 %v684, %v708
        %v710 = vmin.f32 %v709, 1.0
        %v711 = vmax.f32 %v710, -1.0
        %v712 = vmul.f32 %v591, %v591
        %v713 = vmin.f32 16.0, %v712
        %v714 = vmul.f32 %v713, 2.1237322e-06
        %v715 = vadd.f32 %v714, 0.00028619796
        %v716 = vmul.f32 %v713, %v715
        %v717 = vadd.f32 %v716, 0.0036580483
        %v718 = vmul.f32 %v713, %v717
        %v719 = vadd.f32 %v718, 0.05243302
        %v720 = vmul.f32 %v713, %v719
        %v721 = vadd.f32 %v720, 0.18741608
        %v722 = vmul.f32 %v713, %v721
        %v723 = vadd.f32 %v722, 1.1283791
        %v724 = vmul.f32 %v591, %v723
        %v725 = vmul.f32 %v713, 3.8918573e-05
        %v726 = vadd.f32 %v725, 0.001143296
        %v727 = vmul.f32 %v713, %v726
        %v728 = vadd.f32 %v727, 0.014752088
        %v729 = vmul.f32 %v713, %v728
        %v730 = vadd.f32 %v729, 0.112945676
        %v731 = vmul.f32 %v713, %v730
        %v732 = vadd.f32 %v731, 0.4994258
        %v733 = vmul.f32 %v713, %v732
        %v734 = vadd.f32 %v733, 1.0
        %v735 = vrcp.pop %v734
        %v736 = vmul.f32 %v734, %v735
        %v737 = vsub.f32 1.0, %v736
        %v738 = vmul.f32 %v735, %v737
        %v739 = vadd.f32 %v735, %v738
        %vm740 = vweird.f32 %v734
        %vm741 = vweird.f32 %v735
        %vm742 = vmor %vm740, %vm741
        %v743 = vsel %vm742, %v735, %v739
        %v744 = vand.u32 2147483647, %v734
        %vm745 = vcmp.eq.f32.partialorder %v744, 8.507059e+37
        %v746 = vand.u32 %v734, 2147483648
        %v747 = vor.u32 1.1754944e-38, %v746
        %v748 = vsel %vm745, %v747, %v743
        %v749 = vmul.f32 %v724, %v748
        %v750 = vmin.f32 %v749, 1.0
        %v751 = vmax.f32 %v750, -1.0
        %v752 = vadd.f32 %v631, 1.0
        %v753 = vadd.f32 %v671, 1.0
        %v754 = vadd.f32 %v711, 1.0
        %v755 = vadd.f32 %v751, 1.0
        %v756 = vmul.f32 %v584, %v752
        %v757 = vmul.f32 %v585, %v753
        %v758 = vmul.f32 %v586, %v754
        %v759 = vmul.f32 %v587, %v755
        %s760 = smul.u32 %s26, 256
        %p761 = scmp.lt.s32.totalorder %s25, 2
        // Predicated region
        $region49: #{tpu_custom_call.1} parent=31 // pred_check
          %p762 = pneg %p761
        $region50: #{tpu_custom_call.1} parent=31 // pred_check_branch
          %764 = sbr.rel (%p762) target = $region52
        $region51: #{tpu_custom_call.1} parent=31 // pred_region
          %v765 = vpack.c.bf16 %v757, %v756
          %v766 = vpack.c.bf16 %v759, %v758
          %s767 = sshra.s32 %s760, 7
          %s768 = sand.u32 %s760, 127
          %s769 = smul.u32 %s314, 4
          %s770 = sadd.s32 %s767, %s769
          %s771 = smul.addr %s770, 4
          %s772 = scalar_lea.vmem [#allocation2], %s771
          %773 = vst [vmem:[%s772] sm:$0xff] %v765
          %774 = vst [vmem:[%s772 + $0x8] sm:$0xff] %v766
        $region52: #{tpu_custom_call.1} parent=31 // pred_fallthru
          _
        %p775 = scmp.eq.s32.totalorder %s25, 2
        // Predicated region
        $region53: #{tpu_custom_call.1} parent=31 // pred_check
          %p776 = pneg %p775
        $region54: #{tpu_custom_call.1} parent=31 // pred_check_branch
          %778 = sbr.rel (%p776) target = $region56
        $region55: #{tpu_custom_call.1} parent=31 // pred_region
          %s779 = sshra.s32 %s760, 7
          %s780 = sand.u32 %s760, 127
          %s781 = smul.addr %s779, 8
          %s782 = scalar_lea.vmem [#allocation9], %s781
          %783 = vst [vmem:[%s782] sm:$0xff] %v756
          %784 = vst [vmem:[%s782 + $0x8] sm:$0xff] %v757
          %785 = vst [vmem:[%s782 + $0x10] sm:$0xff] %v758
          %786 = vst [vmem:[%s782 + $0x18] sm:$0xff] %v759
        $region56: #{tpu_custom_call.1} parent=31 // pred_fallthru
          _
        // Predicated region
        $region57: #{tpu_custom_call.1} parent=31 // pred_check
          %p787 = pneg %p138
        $region58: #{tpu_custom_call.1} parent=31 // pred_check_branch
          %789 = sbr.rel (%p787) target = $region60
        $region59: #{tpu_custom_call.1} parent=31 // pred_region
          %s790 = smul.u32 2, %s24
          %792 = vsyncadd [#allocation5], 0
          %s793 = smul.addr %s790, 2
          %s794 = smul.addr %s793, 8
          %s795 = scalar_lea.hbm %s3, %s794
          %s796 = sshll.u32 [#allocation9], 4
          %s797 = int_to_ptr.vmem [resolvable:$true] %s796
          %s798 = sshll.u32 %s795, 4
          %s799 = int_to_ptr.hbm [resolvable:$true] %s798
          %804 = dma.vmem_to_hbm [thread:$0]  %s797, 512, %s799, [#allocation5], 256, 256, 16
        $region60: #{tpu_custom_call.1} parent=31 // pred_fallthru
          _
        // Predicated region
        $region61: #{tpu_custom_call.1} parent=31 // pred_check
          %p805 = pneg %p138
        $region62: #{tpu_custom_call.1} parent=31 // pred_check_branch
          %807 = sbr.rel (%p805) target = $region64
        $region63: #{tpu_custom_call.1} parent=31 // pred_region
          %809 = dma.done [#allocation5], 512
        $region64: #{tpu_custom_call.1} parent=31 // pred_fallthru
          _
      $region32: #{tpu_custom_call.1} parent=5 // pred_fallthru
        _
      %p810 = scmp.le.s32.totalorder 2, %s14
      // Predicated region
      $region65: #{tpu_custom_call.1} parent=5 // pred_check
        %p811 = pneg %p810
      $region66: #{tpu_custom_call.1} parent=5 // pred_check_branch
        %813 = sbr.rel (%p811) target = $region68
      $region67: #{tpu_custom_call.1} parent=5 // pred_region
        %s814 = ssub.s32 %s14, 2
      $region68: #{tpu_custom_call.1} parent=5 // pred_fallthru
        _
    $region6: #{tpu_custom_call.1} parent=1 // loop_footer
      %s18 = sadd.s32 1, %s14
    $region7: #{tpu_custom_call.1} parent=1 // loop_footer_branch
      %13 = sbr.rel target = $region3
    $region8: #{tpu_custom_call.1} parent=1 // loop_exit
      _
    %815 = vsyncpa [#allocation4], 1
    %s816 = scalar_lea.sflag [#allocation4], 1
    %817 = vsyncpa %s816, 1
    %818 = vsyncpa [#allocation7], 1
    %s819 = scalar_lea.sflag [#allocation7], 1
    %820 = vsyncpa %s819, 1
    %821 = vsyncpa [#allocation5], 1
    %s822 = scalar_lea.sflag [#allocation5], 1
    %823 = vsyncpa %s822, 1

</llo_original>
